<compile_context>
chip_gen: v5e
topology: v5e:2x2
jax: 0.10.0
libtpu: 0.0.40
codegen_flags: <defaults>
</compile_context>

<pallas_src>
import jax
import jax.numpy as jnp
from jax.experimental import pallas as pl
from jax.experimental.pallas import tpu as pltpu

IN_LO, IN_HI = 10, 30              # static column slice from the module
IN_FEATURES = IN_HI - IN_LO        # 20


def _stream_sum_kernel(x_ref, w_ref, o_ref, acc_ref):
    """Streaming batch reduction.

    x_ref:   (bp, L) VMEM block of the (possibly lane-packed) activations
    w_ref:   (1, L)  VMEM lane-aligned W column sums (zeros outside cols 10:30)
    o_ref:   (1, 1)  SMEM scalar output
    acc_ref: (1, L)  VMEM per-lane partial-sum accumulator (resident over grid)
    """
    i = pl.program_id(0)

    @pl.when(i == 0)
    def _init():
        acc_ref[...] = jnp.zeros_like(acc_ref)

    # Per-step work: sublane-direction sum of the block (VPU adds, fully hidden
    # under the multi-MiB HBM->VMEM DMA).  No cross-lane reduce, no scalar RMW.
    acc_ref[...] += jnp.sum(x_ref[...], axis=0, keepdims=True)

    @pl.when(i == pl.num_programs(0) - 1)
    def _finish():
        # One cross-lane reduce + dot with the zero-padded W column sums.
        o_ref[0, 0] = jnp.sum(acc_ref[...] * w_ref[...])


def model_forward(input_, weight, bias, *, target_block_bytes=12 * 1024 * 1024):
    """Forward of Model: (input_[:, 10:30] @ weight.T + bias).sum().

    input_: [B, F>=30] float; weight: [20, 20] (out, in) torch layout; bias: [20].
    """
    x = input_.astype(jnp.float32)
    B, F = x.shape
    assert F >= IN_HI, "input must have at least 30 feature columns"

    w_colsum = jnp.sum(weight.astype(jnp.float32), axis=0)            # (20,)
    bias_total = jnp.float32(B) * jnp.sum(bias.astype(jnp.float32))   # scalar

    # ---- choose a lane-dense, copy-free view of the activations -------------
    if F <= 128 and 128 % F == 0 and (B * F) % 128 == 0:
        # Free, metadata-only reshape: pack 128//F rows per 128-wide lane row.
        rows_per_lane_row = 128 // F
        L = 128
        x_view = x.reshape((B * F) // 128, 128)
        w_f = jnp.zeros((F,), jnp.float32).at[IN_LO:IN_HI].set(w_colsum)
        w_lane = jnp.tile(w_f, rows_per_lane_row).reshape(1, L)
    else:
        # Generic path: stream a <=128-wide lane window that contains cols 10:30.
        L = F if F <= 128 else 128
        x_view = x
        w_lane = jnp.zeros((L,), jnp.float32).at[IN_LO:IN_HI].set(
            w_colsum).reshape(1, L)

    R = x_view.shape[0]

    # ---- block size: ~target_block_bytes of VMEM per buffer -----------------
    vmem_bytes_per_row = max(L, 128) * 4        # last dim is lane-padded to 128
    bp = max(8, (target_block_bytes // vmem_bytes_per_row) // 8 * 8)
    if R <= bp:
        bp = R                                   # full-extent block (legal)
        n_blocks = 1 if R > 0 else 0
    else:
        n_blocks = R // bp                       # multiples of 8 rows
    main_rows = n_blocks * bp

    main_sum = jnp.float32(0.0)
    if n_blocks > 0:
        main_sum = pl.pallas_call(
            _stream_sum_kernel,
            out_shape=jax.ShapeDtypeStruct((1, 1), jnp.float32),
            grid=(n_blocks,),
            in_specs=[
                pl.BlockSpec((bp, L), lambda i: (i, 0)),        # activations
                pl.BlockSpec((1, L), lambda i: (0, 0)),         # W column sums
            ],
            out_specs=pl.BlockSpec(memory_space=pltpu.MemorySpace.SMEM),
            scratch_shapes=[pltpu.VMEM((1, L), jnp.float32)],
            compiler_params=pltpu.CompilerParams(
                dimension_semantics=("arbitrary",),             # reduction axis
                vmem_limit_bytes=44 * 1024 * 1024),
        )(x_view, w_lane)[0, 0]

    # Ragged tail (< one block): tiny, handled here instead of jnp.pad-ing x
    # (which would materialize a full HBM copy of the activations).
    tail_sum = jnp.float32(0.0)
    if main_rows < R:
        tail = x_view[main_rows:, :L]
        tail_sum = jnp.dot(jnp.sum(tail, axis=0), w_lane[0])

    # TODO(synk): on v7x, shard the reduction over both TensorCores with a
    # leading size-2 "parallel" grid axis and per-core partial outputs.
    return main_sum + tail_sum + bias_total


if __name__ == "__main__":
    key = jax.random.PRNGKey(0)
    k_x, k_w, k_b = jax.random.split(key, 3)

    B, F = 8, 32                          # input must have >= 30 feature columns
    x = jax.random.normal(k_x, (B, F), dtype=jnp.float32)

    # Deterministic torch-like init: uniform(-1/sqrt(20), 1/sqrt(20))
    bound = 1.0 / jnp.sqrt(20.0)
    weight = jax.random.uniform(k_w, (20, 20), minval=-bound, maxval=bound,
                                dtype=jnp.float32)
    bias = jax.random.uniform(k_b, (20,), minval=-bound, maxval=bound,
                              dtype=jnp.float32)

    result = jax.block_until_ready(model_forward(x, weight, bias))

    # Reference check in plain JAX (summation order differs -> small tolerance)
    ref = jnp.sum(x[:, 10:30] @ weight.T + bias)
    assert jnp.allclose(result, ref, rtol=1e-4, atol=1e-4), (result, ref)

    print("KERNEL_OK")
</pallas_src>

<mosaic_0001>
module attributes {stable_mosaic.version = 11 : i64} {
  func.func @_stream_sum_kernel(%arg0: i32, %arg1: memref<2x128xf32, #tpu.memory_space<vmem>>, %arg2: memref<1x128xf32, #tpu.memory_space<vmem>>, %arg3: memref<1x1xf32, #tpu.memory_space<smem>>, %arg4: memref<1x128xf32, #tpu.memory_space<vmem>>) attributes {dimension_semantics = [#tpu.dimension_semantics<arbitrary>], iteration_bounds = array<i64: 1>, scalar_prefetch = 0 : i64, scratch_operands = 1 : i64, tpu.core_type = #tpu.core_type<tc>, window_params = [{transform_indices = @transform_0, window_bounds = array<i64: 2, 128>}, {pipeline_mode = #tpu.pipeline_mode<synchronous>, transform_indices = @transform_1, window_bounds = array<i64: 1, 128>}, {transform_indices = @transform_2, window_bounds = array<i64: 1, 1>}]} {
    %c0_i32 = arith.constant 0 : i32
    %0 = arith.cmpi eq, %arg0, %c0_i32 : i32
    %1 = arith.extui %0 : i1 to i32
    %c0_i32_0 = arith.constant 0 : i32
    %2 = arith.cmpi ne, %1, %c0_i32_0 : i32
    scf.if %2 {
      %cst_8 = arith.constant 0.000000e+00 : f32
      %12 = vector.broadcast %cst_8 : f32 to vector<1x128xf32>
      %c0_9 = arith.constant 0 : index
      %c0_10 = arith.constant 0 : index
      %13 = vector.load %arg4[%c0_9, %c0_10] : memref<1x128xf32, #tpu.memory_space<vmem>>, vector<1x128xf32>
      tpu.vector_store %arg4[%c0_9, %c0_10], %12 {strides = array<i32>} : memref<1x128xf32, #tpu.memory_space<vmem>>, vector<1x128xf32>,
    } else {
    }
    %c0 = arith.constant 0 : index
    %c0_1 = arith.constant 0 : index
    %3 = vector.load %arg4[%c0, %c0_1] : memref<1x128xf32, #tpu.memory_space<vmem>>, vector<1x128xf32>
    %c0_2 = arith.constant 0 : index
    %c0_3 = arith.constant 0 : index
    %4 = vector.load %arg1[%c0_2, %c0_3] : memref<2x128xf32, #tpu.memory_space<vmem>>, vector<2x128xf32>
    %cst = arith.constant dense<0.000000e+00> : vector<128xf32>
    %5 = vector.multi_reduction <add>, %4, %cst [0] : vector<2x128xf32> to vector<128xf32>
    %6 = vector.shape_cast %5 : vector<128xf32> to vector<1x128xf32>
    %7 = arith.addf %3, %6 : vector<1x128xf32>
    %c0_4 = arith.constant 0 : index
    %c0_5 = arith.constant 0 : index
    %8 = vector.load %arg4[%c0_4, %c0_5] : memref<1x128xf32, #tpu.memory_space<vmem>>, vector<1x128xf32>
    tpu.vector_store %arg4[%c0_4, %c0_5], %7 {strides = array<i32>} : memref<1x128xf32, #tpu.memory_space<vmem>>, vector<1x128xf32>,
    %c0_i32_6 = arith.constant 0 : i32
    %9 = arith.cmpi eq, %arg0, %c0_i32_6 : i32
    %10 = arith.extui %9 : i1 to i32
    %c0_i32_7 = arith.constant 0 : i32
    %11 = arith.cmpi ne, %10, %c0_i32_7 : i32
    scf.if %11 {
      %c0_8 = arith.constant 0 : index
      %c0_9 = arith.constant 0 : index
      %12 = vector.load %arg4[%c0_8, %c0_9] : memref<1x128xf32, #tpu.memory_space<vmem>>, vector<1x128xf32>
      %c0_10 = arith.constant 0 : index
      %c0_11 = arith.constant 0 : index
      %13 = vector.load %arg2[%c0_10, %c0_11] : memref<1x128xf32, #tpu.memory_space<vmem>>, vector<1x128xf32>
      %14 = arith.mulf %12, %13 : vector<1x128xf32>
      %15 = vector.shape_cast %14 : vector<1x128xf32> to vector<1x1x128xf32>
      %cst_12 = arith.constant dense<0.000000e+00> : vector<1xf32>
      %16 = vector.multi_reduction <add>, %15, %cst_12 [1, 2] : vector<1x1x128xf32> to vector<1xf32>
      %17 = vector.shape_cast %16 : vector<1xf32> to vector<1x1x1xf32>
      %18 = vector.extract %17[0, 0, 0] : f32 from vector<1x1x1xf32>
      %c0_13 = arith.constant 0 : index
      %c0_14 = arith.constant 0 : index
      %19 = memref.load %arg3[%c0_13, %c0_14] : memref<1x1xf32, #tpu.memory_space<smem>>
      memref.store %18, %arg3[%c0_13, %c0_14] : memref<1x1xf32, #tpu.memory_space<smem>>
    } else {
    }
    return
  }
  func.func @transform_0(%arg0: i32) -> (i32, i32) {
    %c0_i32 = arith.constant 0 : i32
    %c0_i32_0 = arith.constant 0 : i32
    return %arg0, %c0_i32 : i32, i32
  }
  func.func @transform_1(%arg0: i32) -> (i32, i32) {
    %c0_i32 = arith.constant 0 : i32
    %c0_i32_0 = arith.constant 0 : i32
    %c0_i32_1 = arith.constant 0 : i32
    return %c0_i32, %c0_i32_0 : i32, i32
  }
  func.func @transform_2(%arg0: i32) -> (i32, i32) {
    %c0_i32 = arith.constant 0 : i32
    %c0_i32_0 = arith.constant 0 : i32
    %c0_i32_1 = arith.constant 0 : i32
    return %c0_i32, %c0_i32_0 : i32, i32
  }
}

</mosaic_0001>

<llo_original>
// kernel: tpu_custom_call.1
$region0: #{tpu_custom_call.1}
  #allocation0 [shape = 'u32[]', space=smem, size = 0x4, offset = 0x4, fixed_abs, tag = 'smem constant byte address 0x4 - core index']
  #allocation1 [shape = 'u32[72,128]{1,0:T(1,128)}', space=vmem, size = 0x9000, scoped, tag = 'internal scratch']
  #allocation2 [shape = 'f32[1,128]{1,0:T(1,128)}', space=vmem, size = 0x200, scoped, tag = 'scratch operand']
  %s0 = inlined_call_operand.hbm [shape: f32[2,128], index: 0, kind: input, shape index: {}]
  %s1 = inlined_call_operand.hbm [shape: f32[1,128], index: 1, kind: input, shape index: {}]
  %s2 = inlined_call_operand.hbm [shape: f32[1,1], index: 2, kind: output, shape index: {}]
  %s3 = sld [smem:[#allocation0]]
  $region34: #{tpu_custom_call.1} parent=0
    _
  %s5 = ssub.s32 1, %s3
  %s6 = scalar_select 0, %s5, %s3
  $region1: #{tpu_custom_call.1} parent=0
    #allocation3 [shape = 'u8[1024]{0}', space=vmem, size = 0x400, scoped, tag = 'input window, operand 0, single buffered']
    #allocation4 [shape = 's32[1]{0}', space=sflag, size = 0x4, scoped, tag = 'scoped memory for tpu_custom_call.1']
    #allocation5 [shape = 's32[1]{0}', space=sflag, size = 0x4, scoped, tag = 'scoped memory for tpu_custom_call.1']
    #allocation6 [shape = 'u8[512]{0}', space=vmem, size = 0x400, scoped, tag = 'input window, operand 1, single buffered']
    #allocation7 [shape = 's32[1]{0}', space=sflag, size = 0x4, scoped, tag = 'scoped memory for tpu_custom_call.1']
    #allocation8 [shape = 'u8[512]{0}', space=smem, size = 0x200, scoped, tag = 'output window, operand 0, single buffered']
    %7 = vsyncpa [#allocation4], 0
    %8 = vsyncpa [#allocation7], 0
    %9 = vsyncpa [#allocation5], 0
    // Predicated region
    $region2: #{tpu_custom_call.1} parent=1 // pred_check
      _
    $region3: #{tpu_custom_call.1} parent=1 // pred_check_branch
      %11 = sbr.rel (0) target = $region5
    $region4: #{tpu_custom_call.1} parent=1 // pred_region
      %13 = vsyncadd [#allocation4], 0
      %s15 = sshll.u32 %s0, 4
      %s16 = int_to_ptr.hbm [resolvable:$true] %s15
      %s17 = sshll.u32 [#allocation3], 4
      %s18 = int_to_ptr.vmem [resolvable:$true] %s17
      %20 = dma.hbm_to_vmem [thread:$0]  %s16, 32, %s18, [#allocation4]
    $region5: #{tpu_custom_call.1} parent=1 // pred_fallthru
      _
    // Predicated region
    $region6: #{tpu_custom_call.1} parent=1 // pred_check
      _
    $region7: #{tpu_custom_call.1} parent=1 // pred_check_branch
      %22 = sbr.rel (0) target = $region9
    $region8: #{tpu_custom_call.1} parent=1 // pred_region
      %24 = vsyncadd [#allocation7], 0
      %s26 = sshll.u32 %s1, 4
      %s27 = int_to_ptr.hbm [resolvable:$true] %s26
      %s28 = sshll.u32 [#allocation6], 4
      %s29 = int_to_ptr.vmem [resolvable:$true] %s28
      %31 = dma.hbm_to_vmem [thread:$0]  %s27, 16, %s29, [#allocation7]
    $region9: #{tpu_custom_call.1} parent=1 // pred_fallthru
      _
    // Predicated region
    $region10: #{tpu_custom_call.1} parent=1 // pred_check
      _
    $region11: #{tpu_custom_call.1} parent=1 // pred_check_branch
      %33 = sbr.rel (0) target = $region13
    $region12: #{tpu_custom_call.1} parent=1 // pred_region
      %35 = dma.done [#allocation4], 32
    $region13: #{tpu_custom_call.1} parent=1 // pred_fallthru
      _
    // Predicated region
    $region14: #{tpu_custom_call.1} parent=1 // pred_check
      _
    $region15: #{tpu_custom_call.1} parent=1 // pred_check_branch
      %37 = sbr.rel (0) target = $region17
    $region16: #{tpu_custom_call.1} parent=1 // pred_region
      %39 = dma.done [#allocation7], 16
    $region17: #{tpu_custom_call.1} parent=1 // pred_fallthru
      _
    %p40 = scmp.eq.s32.totalorder 0, 0
    // Predicated region
    $region18: #{tpu_custom_call.1} parent=1 // pred_check
      %p41 = pneg %p40
    $region19: #{tpu_custom_call.1} parent=1 // pred_check_branch
      %43 = sbr.rel (%p41) target = $region21
    $region20: #{tpu_custom_call.1} parent=1 // pred_region
      %44 = vst [vmem:[#allocation2] sm:$0x1] 0.0
    $region21: #{tpu_custom_call.1} parent=1 // pred_fallthru
      _
    %v45 = vld [vmem:[#allocation2] sm:$0x1]
    %v46 = vld [vmem:[#allocation3] sm:$0x3]
    %vm47 = vcmask 1041408
    %v48 = vsel %vm47, %v46, 0.0
    %v49 = vrot.slane %v48, 4
    %v50 = vadd.f32 %v48, %v49
    %v51 = vrot.slane %v50, 2
    %v52 = vadd.f32 %v50, %v51
    %v53 = vrot.slane %v52, 1
    %v54 = vadd.f32 %v52, %v53
    %v55 = vadd.f32 %v45, %v54
    %56 = vst [vmem:[#allocation2] sm:$0x1] %v55
    // Predicated region
    $region22: #{tpu_custom_call.1} parent=1 // pred_check
      %p57 = pneg %p40
    $region23: #{tpu_custom_call.1} parent=1 // pred_check_branch
      %59 = sbr.rel (%p57) target = $region25
    $region24: #{tpu_custom_call.1} parent=1 // pred_region
      %v60 = vld [vmem:[#allocation2] sm:$0x1]
      %v61 = vld [vmem:[#allocation6] sm:$0x1]
      %v62 = vmul.f32 %v60, %v61
      %vm63 = vcmask 1040384
      %v64 = vsel %vm63, %v62, 0.0
      %65 = vadd.xlane.f32.xlu0 %v64
      %v66 = vpop.xlane.xlu0 %65
      %v67 = vrot.slane %v66, 4
      %v68 = vadd.f32 %v66, %v67
      %v69 = vrot.slane %v68, 2
      %v70 = vadd.f32 %v68, %v69
      %v71 = vrot.slane %v70, 1
      %v72 = vadd.f32 %v70, %v71
      %s73 = vtos %v72
      %s74 = scalar_lea.smem [#allocation8], 0
      %75 = sst [smem:[%s74]] %s73
    $region25: #{tpu_custom_call.1} parent=1 // pred_fallthru
      _
    // Predicated region
    $region26: #{tpu_custom_call.1} parent=1 // pred_check
      _
    $region27: #{tpu_custom_call.1} parent=1 // pred_check_branch
      %77 = sbr.rel (0) target = $region29
    $region28: #{tpu_custom_call.1} parent=1 // pred_region
      %79 = vsyncadd [#allocation5], 0
      %s81 = sshll.u32 %s2, 4
      %s82 = int_to_ptr.hbm [resolvable:$true] %s81
      %84 = dma.smem_to_hbm [#allocation8], 16, %s82, [#allocation5]
    $region29: #{tpu_custom_call.1} parent=1 // pred_fallthru
      _
    // Predicated region
    $region30: #{tpu_custom_call.1} parent=1 // pred_check
      _
    $region31: #{tpu_custom_call.1} parent=1 // pred_check_branch
      %86 = sbr.rel (0) target = $region33
    $region32: #{tpu_custom_call.1} parent=1 // pred_region
      %88 = dma.done [#allocation5], 16
    $region33: #{tpu_custom_call.1} parent=1 // pred_fallthru
      _
    %89 = sfence
    %90 = vsyncpa [#allocation4], 1
    %91 = vsyncpa [#allocation7], 1
    %92 = vsyncpa [#allocation5], 1

</llo_original>
